<compile_context>
chip_gen: v5e
topology: v5e:2x2
jax: 0.10.0
libtpu: 0.0.40
codegen_flags: <defaults>
</compile_context>

<pallas_src>
import functools

import jax
import jax.numpy as jnp
from jax.experimental import pallas as pl
from jax.experimental.pallas import tpu as pltpu

# ----------------------------- model dimensions -----------------------------
DISE_NUM = 4                                   # number of diseases
SYM_NUM = 11                                   # number of symptoms
DISE_START = 1                                 # first action slot reserved
NUM_ACTIONS = DISE_START + DISE_NUM + SYM_NUM  # 16
ACT_CARD = NUM_ACTIONS                         # act_cardinality
SLOT_CARD = DISE_NUM + 1 + SYM_NUM             # slot_cardinality = 16
IN_DIM = 2 * ACT_CARD + SLOT_CARD              # input_shape = 48
HIDDEN = 64                                    # hidden_size
BATCH = 2

SLOT_OFF = 2 * ACT_CARD + DISE_NUM + 1         # 37
SLOT_END = 2 * ACT_CARD + SLOT_CARD            # 48  (width = SYM_NUM)

# ------------------- constant-slab layout (8-row aligned) -------------------
R_W1 = 0                     # (IN_DIM, HIDDEN)        rows   0:48 , cols 0:64
R_B1 = 48                    # (1, HIDDEN)             row     48  , cols 0:64
R_W2 = 56                    # (HIDDEN, 2*A)           rows  56:120, cols 0:32
R_B2 = 120                   # (1, 2*A)                row    120  , cols 0:32
R_KG = 128                   # (SYM_NUM, A)            rows 128:139, cols 0:16
R_PRIO = 144                 # (1, SYM_NUM)            row    144  , cols 0:11
CST_ROWS = 152
CST_COLS = 128


# --------------------------------- kernel -----------------------------------
def _kr_dqn_kernel(kg_enabled, state_ref, slots_ref, flag_ref, cst_ref, out_ref):
    f32 = jnp.float32
    state = state_ref[...]                                          # (TB, 48)

    # fc1 -> ReLU
    w1 = cst_ref[R_W1:R_W1 + IN_DIM, 0:HIDDEN]                      # (48, 64)
    b1 = cst_ref[R_B1:R_B1 + 1, 0:HIDDEN]                           # (1, 64)
    h = jnp.maximum(
        jnp.dot(state, w1, preferred_element_type=f32) + b1, 0.0)   # (TB, 64)

    if kg_enabled:
        # fused fc2 + relation:  h @ [w2 | w2 @ softmax(tran)] + [b2 | b2 @ sm]
        w2c = cst_ref[R_W2:R_W2 + HIDDEN, 0:2 * NUM_ACTIONS]        # (64, 32)
        b2c = cst_ref[R_B2:R_B2 + 1, 0:2 * NUM_ACTIONS]             # (1, 32)
        qr = jnp.dot(h, w2c, preferred_element_type=f32) + b2c      # (TB, 32)
        q = qr[:, :NUM_ACTIONS]
        rel = qr[:, NUM_ACTIONS:]

        # knowledge-graph branch: both matmuls + action scatter folded into kgw
        slots = slots_ref[...]                                      # (TB, 11)
        prior = cst_ref[R_PRIO:R_PRIO + 1, 0:SYM_NUM]               # (1, 11)
        spp = jnp.where((slots == 0.0) | (slots == -2.0), prior, slots)
        kgw = cst_ref[R_KG:R_KG + SYM_NUM, 0:NUM_ACTIONS]           # (11, 16)
        rule = jnp.dot(spp, kgw, preferred_element_type=f32)        # (TB, 16)

        out = jax.nn.sigmoid(q) + jax.nn.sigmoid(rel) + rule
    else:
        w2 = cst_ref[R_W2:R_W2 + HIDDEN, 0:NUM_ACTIONS]             # (64, 16)
        b2 = cst_ref[R_B2:R_B2 + 1, 0:NUM_ACTIONS]                  # (1, 16)
        q = jnp.dot(h, w2, preferred_element_type=f32) + b2
        out = jax.nn.sigmoid(q)

    out_ref[...] = out * flag_ref[...]


# -------------------------------- wrapper ------------------------------------
def _build_const_slab(params):
    """Fold softmax(tran_mat) into fc2 and the KG chain into one matrix, and pack
    every constant operand into a single (CST_ROWS, 128) f32 VMEM slab."""
    f32 = jnp.float32
    w1, b1 = params["w1"], params["b1"]
    w2, b2 = params["w2"], params["b2"]

    sm = jax.nn.softmax(params["tran_mat"], axis=0)                  # (A, A)
    w2c = jnp.concatenate([w2, jnp.dot(w2, sm)], axis=1)             # (64, 2A)
    b2c = jnp.concatenate([b2, jnp.dot(b2, sm)], axis=1)             # (1, 2A)

    s2d = params["sym_dise_mat"]                                     # (S, D)
    d2s = params["dise_sym_mat"]                                     # (D, S)
    kg_w = jnp.zeros((SYM_NUM, NUM_ACTIONS), f32)
    kg_w = kg_w.at[:, DISE_START:DISE_START + DISE_NUM].set(s2d)
    kg_w = kg_w.at[:, DISE_START + DISE_NUM:].set(
        jnp.dot(s2d, d2s, preferred_element_type=f32))

    slab = jnp.zeros((CST_ROWS, CST_COLS), f32)
    slab = slab.at[R_W1:R_W1 + IN_DIM, 0:HIDDEN].set(w1)
    slab = slab.at[R_B1:R_B1 + 1, 0:HIDDEN].set(b1)
    slab = slab.at[R_W2:R_W2 + HIDDEN, 0:2 * NUM_ACTIONS].set(w2c)
    slab = slab.at[R_B2:R_B2 + 1, 0:2 * NUM_ACTIONS].set(b2c)
    slab = slab.at[R_KG:R_KG + SYM_NUM, 0:NUM_ACTIONS].set(kg_w)
    slab = slab.at[R_PRIO:R_PRIO + 1, 0:SYM_NUM].set(params["sym_prio"])
    return slab


def kr_dqn_forward(state, sym_flag, params, *, kg_enabled=True):
    """Full KR_DQN forward in one Pallas call.

    state:    (B, IN_DIM) float32
    sym_flag: (B, NUM_ACTIONS) float32
    returns:  (B, NUM_ACTIONS) float32
    """
    f32 = jnp.float32
    b = state.shape[0]

    # Lane-dense pre-slice of the symptom-slot region (wrapper-side layout).
    slots = state[:, SLOT_OFF:SLOT_END]                              # (B, S)

    slab = _build_const_slab(params)

    # Batch tile: whole (8-padded) batch for small B, 512-row tiles otherwise.
    tb = 512 if b >= 512 else max(8, ((b + 7) // 8) * 8)
    b_pad = ((b + tb - 1) // tb) * tb
    pad = b_pad - b
    if pad:
        state_p = jnp.pad(state, ((0, pad), (0, 0)))
        slots_p = jnp.pad(slots, ((0, pad), (0, 0)))
        flag_p = jnp.pad(sym_flag, ((0, pad), (0, 0)))
    else:
        state_p, slots_p, flag_p = state, slots, sym_flag

    grid = (b_pad // tb,)
    kernel = functools.partial(_kr_dqn_kernel, kg_enabled)
    out = pl.pallas_call(
        kernel,
        out_shape=jax.ShapeDtypeStruct((b_pad, NUM_ACTIONS), f32),
        grid_spec=pltpu.PrefetchScalarGridSpec(
            num_scalar_prefetch=0,
            grid=grid,
            in_specs=[
                pl.BlockSpec((tb, IN_DIM), lambda i: (i, 0)),
                pl.BlockSpec((tb, SYM_NUM), lambda i: (i, 0)),
                pl.BlockSpec((tb, NUM_ACTIONS), lambda i: (i, 0)),
                pl.BlockSpec((CST_ROWS, CST_COLS), lambda i: (0, 0)),
            ],
            out_specs=pl.BlockSpec((tb, NUM_ACTIONS), lambda i: (i, 0)),
        ),
        compiler_params=pltpu.CompilerParams(
            dimension_semantics=("parallel",)),
    )(state_p, slots_p, flag_p, slab)
    return out[:b]


# -------------------------- deterministic parameters -------------------------
def make_params(key):
    ks = jax.random.split(key, 8)
    f32 = jnp.float32
    bound1 = 1.0 / (IN_DIM ** 0.5)
    bound2 = 1.0 / (HIDDEN ** 0.5)
    w1 = jax.random.uniform(ks[0], (IN_DIM, HIDDEN), f32, -bound1, bound1)
    b1 = jax.random.uniform(ks[1], (1, HIDDEN), f32, -bound1, bound1)
    w2 = jax.random.uniform(ks[2], (HIDDEN, NUM_ACTIONS), f32, -bound2, bound2)
    b2 = jax.random.uniform(ks[3], (1, NUM_ACTIONS), f32, -bound2, bound2)
    tran = jax.random.uniform(ks[4], (NUM_ACTIONS, NUM_ACTIONS), f32, -bound2, bound2)
    sym_dise = jax.random.uniform(ks[5], (SYM_NUM, DISE_NUM), f32, 0.0, 1.0)
    dise_sym = jax.random.uniform(ks[6], (DISE_NUM, SYM_NUM), f32, 0.0, 1.0)
    sym_prio = jax.random.uniform(ks[7], (1, SYM_NUM), f32, 0.01, 1.0)
    return dict(w1=w1, b1=b1, w2=w2, b2=b2, tran_mat=tran,
                sym_dise_mat=sym_dise, dise_sym_mat=dise_sym, sym_prio=sym_prio)


# ------------------------------ pure-JAX reference ----------------------------
def _reference(state, sym_flag, p, kg_enabled=True):
    h = jnp.maximum(state @ p["w1"] + p["b1"], 0.0)
    x = h @ p["w2"] + p["b2"]
    if not kg_enabled:
        return jax.nn.sigmoid(x) * sym_flag
    relation = x @ jax.nn.softmax(p["tran_mat"], axis=0)

    slots = state[:, SLOT_OFF:SLOT_END]
    prior = jnp.broadcast_to(p["sym_prio"], slots.shape)
    spp = jnp.where(slots == 0.0, prior, slots)
    spp = jnp.where(spp == -2.0, prior, spp)
    dise_prob = spp @ p["sym_dise_mat"]
    sym_prob = dise_prob @ p["dise_sym_mat"]
    rule = jnp.zeros((state.shape[0], NUM_ACTIONS), jnp.float32)
    rule = rule.at[:, DISE_START:DISE_START + DISE_NUM].set(dise_prob)
    rule = rule.at[:, DISE_START + DISE_NUM:].set(sym_prob)

    out = jax.nn.sigmoid(x) + jax.nn.sigmoid(relation) + rule
    return out * sym_flag


# ----------------------------------- main -------------------------------------
if __name__ == "__main__":
    key = jax.random.PRNGKey(0)
    k_state, k_slot, k_flag, k_params = jax.random.split(key, 4)

    state = jax.random.normal(k_state, (BATCH, IN_DIM), jnp.float32)
    # symptom-slot region takes dialogue-state codes: -2 (not-sure), 0 (unknown),
    # 1 (present), 0.5 (other) so both `where` branches get exercised.
    slot_vals = jnp.array([-2.0, 0.0, 1.0, 0.5], jnp.float32)
    slot_idx = jax.random.randint(k_slot, (BATCH, SYM_NUM), 0, 4)
    state = state.at[:, SLOT_OFF:SLOT_END].set(slot_vals[slot_idx])

    sym_flag = jax.random.bernoulli(k_flag, 0.7, (BATCH, NUM_ACTIONS)).astype(jnp.float32)
    params = make_params(k_params)

    out = kr_dqn_forward(state, sym_flag, params, kg_enabled=True)
    out = jax.block_until_ready(out)

    ref = _reference(state, sym_flag, params, kg_enabled=True)
    assert out.shape == (BATCH, NUM_ACTIONS)
    err = float(jnp.max(jnp.abs(out - ref)))
    assert jnp.allclose(out, ref, atol=2e-4, rtol=2e-4), err

    print("KERNEL_OK")
</pallas_src>

<mosaic_0001>
module attributes {stable_mosaic.version = 11 : i64} {
  func.func @_kr_dqn_kernel(%arg0: i32, %arg1: memref<8x48xf32, #tpu.memory_space<vmem>>, %arg2: memref<8x11xf32, #tpu.memory_space<vmem>>, %arg3: memref<8x16xf32, #tpu.memory_space<vmem>>, %arg4: memref<152x128xf32, #tpu.memory_space<vmem>>, %arg5: memref<8x16xf32, #tpu.memory_space<vmem>>) attributes {dimension_semantics = [#tpu.dimension_semantics<parallel>], iteration_bounds = array<i64: 1>, scalar_prefetch = 0 : i64, scratch_operands = 0 : i64, tpu.core_type = #tpu.core_type<tc>, window_params = [{transform_indices = @transform_0, window_bounds = array<i64: 8, 48>}, {transform_indices = @transform_1, window_bounds = array<i64: 8, 11>}, {transform_indices = @transform_2, window_bounds = array<i64: 8, 16>}, {pipeline_mode = #tpu.pipeline_mode<synchronous>, transform_indices = @transform_3, window_bounds = array<i64: 152, 128>}, {transform_indices = @transform_4, window_bounds = array<i64: 8, 16>}]} {
    %c0 = arith.constant 0 : index
    %c0_0 = arith.constant 0 : index
    %0 = vector.load %arg1[%c0, %c0_0] : memref<8x48xf32, #tpu.memory_space<vmem>>, vector<8x48xf32>
    %c0_1 = arith.constant 0 : index
    %c0_2 = arith.constant 0 : index
    %1 = vector.load %arg4[%c0_1, %c0_2] : memref<152x128xf32, #tpu.memory_space<vmem>>, vector<48x64xf32>
    %c48 = arith.constant 48 : index
    %c0_3 = arith.constant 0 : index
    %2 = vector.load %arg4[%c48, %c0_3] : memref<152x128xf32, #tpu.memory_space<vmem>>, vector<1x64xf32>
    %cst = arith.constant dense<0.000000e+00> : vector<8x64xf32>
    %3 = tpu.matmul %0, %1, %cst {dimension_numbers = #tpu.dot_dimension_numbers<[1], [0], [0], [1], [0, 0, 1, 1], [], []>} : vector<8x48xf32>, vector<48x64xf32>, vector<8x64xf32> -> vector<8x64xf32>
    %4 = vector.broadcast %2 : vector<1x64xf32> to vector<8x64xf32>
    %5 = arith.addf %3, %4 : vector<8x64xf32>
    %cst_4 = arith.constant 0.000000e+00 : f32
    %6 = vector.broadcast %cst_4 : f32 to vector<8x64xf32>
    %7 = arith.maximumf %5, %6 : vector<8x64xf32>
    %c56 = arith.constant 56 : index
    %c0_5 = arith.constant 0 : index
    %8 = vector.load %arg4[%c56, %c0_5] : memref<152x128xf32, #tpu.memory_space<vmem>>, vector<64x32xf32>
    %c120 = arith.constant 120 : index
    %c0_6 = arith.constant 0 : index
    %9 = vector.load %arg4[%c120, %c0_6] : memref<152x128xf32, #tpu.memory_space<vmem>>, vector<1x32xf32>
    %cst_7 = arith.constant dense<0.000000e+00> : vector<8x32xf32>
    %10 = tpu.matmul %7, %8, %cst_7 {dimension_numbers = #tpu.dot_dimension_numbers<[1], [0], [0], [1], [0, 0, 1, 1], [], []>} : vector<8x64xf32>, vector<64x32xf32>, vector<8x32xf32> -> vector<8x32xf32>
    %11 = vector.broadcast %9 : vector<1x32xf32> to vector<8x32xf32>
    %12 = arith.addf %10, %11 : vector<8x32xf32>
    %13 = vector.extract_strided_slice %12 {offsets = [0, 0], sizes = [8, 16], strides = [1, 1]} : vector<8x32xf32> to vector<8x16xf32>
    %14 = vector.extract_strided_slice %12 {offsets = [0, 16], sizes = [8, 16], strides = [1, 1]} : vector<8x32xf32> to vector<8x16xf32>
    %c0_8 = arith.constant 0 : index
    %c0_9 = arith.constant 0 : index
    %15 = vector.load %arg2[%c0_8, %c0_9] : memref<8x11xf32, #tpu.memory_space<vmem>>, vector<8x11xf32>
    %c144 = arith.constant 144 : index
    %c0_10 = arith.constant 0 : index
    %16 = vector.load %arg4[%c144, %c0_10] : memref<152x128xf32, #tpu.memory_space<vmem>>, vector<1x11xf32>
    %cst_11 = arith.constant 0.000000e+00 : f32
    %17 = vector.broadcast %cst_11 : f32 to vector<8x11xf32>
    %18 = arith.cmpf oeq, %15, %17 : vector<8x11xf32>
    %cst_12 = arith.constant -2.000000e+00 : f32
    %19 = vector.broadcast %cst_12 : f32 to vector<8x11xf32>
    %20 = arith.cmpf oeq, %15, %19 : vector<8x11xf32>
    %21 = arith.ori %18, %20 : vector<8x11xi1>
    %22 = vector.shape_cast %16 : vector<1x11xf32> to vector<1x11xf32>
    %23 = vector.broadcast %22 : vector<1x11xf32> to vector<8x11xf32>
    %24 = arith.select %21, %23, %15 : vector<8x11xi1>, vector<8x11xf32>
    %c128 = arith.constant 128 : index
    %c0_13 = arith.constant 0 : index
    %25 = vector.load %arg4[%c128, %c0_13] : memref<152x128xf32, #tpu.memory_space<vmem>>, vector<11x16xf32>
    %cst_14 = arith.constant dense<0.000000e+00> : vector<8x16xf32>
    %26 = tpu.matmul %24, %25, %cst_14 {dimension_numbers = #tpu.dot_dimension_numbers<[1], [0], [0], [1], [0, 0, 1, 1], [], []>} : vector<8x11xf32>, vector<11x16xf32>, vector<8x16xf32> -> vector<8x16xf32>
    %27 = arith.negf %13 : vector<8x16xf32>
    %28 = math.exp %27 : vector<8x16xf32>
    %cst_15 = arith.constant 1.000000e+00 : f32
    %29 = vector.broadcast %cst_15 : f32 to vector<8x16xf32>
    %30 = arith.addf %29, %28 : vector<8x16xf32>
    %31 = arith.divf %29, %30 : vector<8x16xf32>
    %32 = arith.negf %14 : vector<8x16xf32>
    %33 = math.exp %32 : vector<8x16xf32>
    %cst_16 = arith.constant 1.000000e+00 : f32
    %34 = vector.broadcast %cst_16 : f32 to vector<8x16xf32>
    %35 = arith.addf %34, %33 : vector<8x16xf32>
    %36 = arith.divf %34, %35 : vector<8x16xf32>
    %37 = arith.addf %31, %36 : vector<8x16xf32>
    %38 = arith.addf %37, %26 : vector<8x16xf32>
    %c0_17 = arith.constant 0 : index
    %c0_18 = arith.constant 0 : index
    %39 = vector.load %arg3[%c0_17, %c0_18] : memref<8x16xf32, #tpu.memory_space<vmem>>, vector<8x16xf32>
    %40 = arith.mulf %38, %39 : vector<8x16xf32>
    %c0_19 = arith.constant 0 : index
    %c0_20 = arith.constant 0 : index
    %41 = vector.load %arg5[%c0_19, %c0_20] : memref<8x16xf32, #tpu.memory_space<vmem>>, vector<8x16xf32>
    tpu.vector_store %arg5[%c0_19, %c0_20], %40 {strides = array<i32>} : memref<8x16xf32, #tpu.memory_space<vmem>>, vector<8x16xf32>,
    return
  }
  func.func @transform_0(%arg0: i32) -> (i32, i32) {
    %c0_i32 = arith.constant 0 : i32
    %c0_i32_0 = arith.constant 0 : i32
    return %arg0, %c0_i32 : i32, i32
  }
  func.func @transform_1(%arg0: i32) -> (i32, i32) {
    %c0_i32 = arith.constant 0 : i32
    %c0_i32_0 = arith.constant 0 : i32
    return %arg0, %c0_i32 : i32, i32
  }
  func.func @transform_2(%arg0: i32) -> (i32, i32) {
    %c0_i32 = arith.constant 0 : i32
    %c0_i32_0 = arith.constant 0 : i32
    return %arg0, %c0_i32 : i32, i32
  }
  func.func @transform_3(%arg0: i32) -> (i32, i32) {
    %c0_i32 = arith.constant 0 : i32
    %c0_i32_0 = arith.constant 0 : i32
    %c0_i32_1 = arith.constant 0 : i32
    return %c0_i32, %c0_i32_0 : i32, i32
  }
  func.func @transform_4(%arg0: i32) -> (i32, i32) {
    %c0_i32 = arith.constant 0 : i32
    %c0_i32_0 = arith.constant 0 : i32
    return %arg0, %c0_i32 : i32, i32
  }
}

</mosaic_0001>

<llo_original>
// kernel: tpu_custom_call.1
$region0: #{tpu_custom_call.1}
  #allocation0 [shape = 'u32[]', space=smem, size = 0x4, offset = 0x4, fixed_abs, tag = 'smem constant byte address 0x4 - core index']
  #allocation1 [shape = 'u32[72,128]{1,0:T(1,128)}', space=vmem, size = 0x9000, scoped, tag = 'internal scratch']
  %s0 = inlined_call_operand.hbm [shape: f32[8,48], index: 0, kind: input, shape index: {}]
  %s1 = inlined_call_operand.hbm [shape: f32[8,11], index: 1, kind: input, shape index: {}]
  %s2 = inlined_call_operand.hbm [shape: f32[8,16], index: 2, kind: input, shape index: {}]
  %s3 = inlined_call_operand.hbm [shape: f32[152,128], index: 3, kind: input, shape index: {}]
  %s4 = inlined_call_operand.hbm [shape: f32[8,16], index: 4, kind: output, shape index: {}]
  %s5 = sld [smem:[#allocation0]]
  $region42: #{tpu_custom_call.1} parent=0
    _
  %s7 = ssub.s32 1, %s5
  %s8 = scalar_select 0, %s7, %s5
  $region1: #{tpu_custom_call.1} parent=0
    #allocation2 [shape = 'u8[4096]{0}', space=vmem, size = 0x1000, scoped, tag = 'input window, operand 0, single buffered']
    #allocation3 [shape = 's32[1]{0}', space=sflag, size = 0x4, scoped, tag = 'scoped memory for tpu_custom_call.1']
    #allocation4 [shape = 's32[1]{0}', space=sflag, size = 0x4, scoped, tag = 'scoped memory for tpu_custom_call.1']
    #allocation5 [shape = 'u8[4096]{0}', space=vmem, size = 0x1000, scoped, tag = 'input window, operand 1, single buffered']
    #allocation6 [shape = 's32[1]{0}', space=sflag, size = 0x4, scoped, tag = 'scoped memory for tpu_custom_call.1']
    #allocation7 [shape = 'u8[4096]{0}', space=vmem, size = 0x1000, scoped, tag = 'input window, operand 2, single buffered']
    #allocation8 [shape = 'u8[77824]{0}', space=vmem, size = 0x13000, scoped, tag = 'input window, operand 3, single buffered']
    #allocation9 [shape = 's32[1]{0}', space=sflag, size = 0x4, scoped, tag = 'scoped memory for tpu_custom_call.1']
    #allocation10 [shape = 'u8[4096]{0}', space=vmem, size = 0x1000, scoped, tag = 'output window, operand 0, single buffered']
    %9 = vsyncpa [#allocation3], 0
    %10 = vsyncpa [#allocation6], 0
    %11 = vsyncpa [#allocation9], 0
    %12 = vsyncpa [#allocation4], 0
    // Predicated region
    $region2: #{tpu_custom_call.1} parent=1 // pred_check
      _
    $region3: #{tpu_custom_call.1} parent=1 // pred_check_branch
      %14 = sbr.rel (0) target = $region5
    $region4: #{tpu_custom_call.1} parent=1 // pred_region
      %16 = vsyncadd [#allocation3], 0
      %s18 = sshll.u32 %s0, 4
      %s19 = int_to_ptr.hbm [resolvable:$true] %s18
      %s20 = sshll.u32 [#allocation2], 4
      %s21 = int_to_ptr.vmem [resolvable:$true] %s20
      %23 = dma.hbm_to_vmem [thread:$0]  %s19, 128, %s21, [#allocation3]
    $region5: #{tpu_custom_call.1} parent=1 // pred_fallthru
      _
    // Predicated region
    $region6: #{tpu_custom_call.1} parent=1 // pred_check
      _
    $region7: #{tpu_custom_call.1} parent=1 // pred_check_branch
      %25 = sbr.rel (0) target = $region9
    $region8: #{tpu_custom_call.1} parent=1 // pred_region
      %27 = vsyncadd [#allocation6], 0
      %s29 = sshll.u32 %s1, 4
      %s30 = int_to_ptr.hbm [resolvable:$true] %s29
      %s31 = sshll.u32 [#allocation5], 4
      %s32 = int_to_ptr.vmem [resolvable:$true] %s31
      %34 = dma.hbm_to_vmem [thread:$0]  %s30, 128, %s32, [#allocation6]
    $region9: #{tpu_custom_call.1} parent=1 // pred_fallthru
      _
    // Predicated region
    $region10: #{tpu_custom_call.1} parent=1 // pred_check
      _
    $region11: #{tpu_custom_call.1} parent=1 // pred_check_branch
      %36 = sbr.rel (0) target = $region13
    $region12: #{tpu_custom_call.1} parent=1 // pred_region
      %38 = vsyncadd [#allocation6], 0
      %s40 = sshll.u32 %s2, 4
      %s41 = int_to_ptr.hbm [resolvable:$true] %s40
      %s42 = sshll.u32 [#allocation7], 4
      %s43 = int_to_ptr.vmem [resolvable:$true] %s42
      %45 = dma.hbm_to_vmem [thread:$0]  %s41, 128, %s43, [#allocation6]
    $region13: #{tpu_custom_call.1} parent=1 // pred_fallthru
      _
    // Predicated region
    $region14: #{tpu_custom_call.1} parent=1 // pred_check
      _
    $region15: #{tpu_custom_call.1} parent=1 // pred_check_branch
      %47 = sbr.rel (0) target = $region17
    $region16: #{tpu_custom_call.1} parent=1 // pred_region
      %49 = vsyncadd [#allocation9], 0
      %s50 = sshll.u32 %s3, 4
      %s51 = int_to_ptr.hbm [resolvable:$true] %s50
      %s52 = sshll.u32 [#allocation8], 4
      %s53 = int_to_ptr.vmem [resolvable:$true] %s52
      %58 = dma.hbm_to_vmem [thread:$0]  %s51, 2432, %s53, [#allocation9], 128, 128, 8
    $region17: #{tpu_custom_call.1} parent=1 // pred_fallthru
      _
    // Predicated region
    $region18: #{tpu_custom_call.1} parent=1 // pred_check
      _
    $region19: #{tpu_custom_call.1} parent=1 // pred_check_branch
      %60 = sbr.rel (0) target = $region21
    $region20: #{tpu_custom_call.1} parent=1 // pred_region
      %62 = dma.done [#allocation3], 128
    $region21: #{tpu_custom_call.1} parent=1 // pred_fallthru
      _
    // Predicated region
    $region22: #{tpu_custom_call.1} parent=1 // pred_check
      _
    $region23: #{tpu_custom_call.1} parent=1 // pred_check_branch
      %64 = sbr.rel (0) target = $region25
    $region24: #{tpu_custom_call.1} parent=1 // pred_region
      %66 = dma.done [#allocation6], 128
    $region25: #{tpu_custom_call.1} parent=1 // pred_fallthru
      _
    // Predicated region
    $region26: #{tpu_custom_call.1} parent=1 // pred_check
      _
    $region27: #{tpu_custom_call.1} parent=1 // pred_check_branch
      %68 = sbr.rel (0) target = $region29
    $region28: #{tpu_custom_call.1} parent=1 // pred_region
      %70 = dma.done [#allocation6], 128
    $region29: #{tpu_custom_call.1} parent=1 // pred_fallthru
      _
    // Predicated region
    $region30: #{tpu_custom_call.1} parent=1 // pred_check
      _
    $region31: #{tpu_custom_call.1} parent=1 // pred_check_branch
      %72 = sbr.rel (0) target = $region33
    $region32: #{tpu_custom_call.1} parent=1 // pred_region
      %74 = dma.done [#allocation9], 2432
    $region33: #{tpu_custom_call.1} parent=1 // pred_fallthru
      _
    %v75 = vld [vmem:[#allocation2] sm:$0xff]
    %v76 = vld [vmem:[#allocation8] sm:$0xff]
    %v77 = vld [vmem:[#allocation8 + $0x8] sm:$0xff]
    %v78 = vld [vmem:[#allocation8 + $0x10] sm:$0xff]
    %v79 = vld [vmem:[#allocation8 + $0x18] sm:$0xff]
    %v80 = vld [vmem:[#allocation8 + $0x20] sm:$0xff]
    %v81 = vld [vmem:[#allocation8 + $0x28] sm:$0xff]
    %v82 = vld [vmem:[#allocation8 + $0x30] sm:$0x1]
    %v83 = vperm.slane %v82, 0
    %vm84 = vcmask 392192
    %v86 = vsel %vm84, %v75, 0
    %88 = vmatpush.msra.mxu0 0.0
    %89 = vmatpush.msra.mxu0 0.0
    %90 = vmatpush.msra.mxu0 0.0
    %91 = vmatpush.msra.mxu0 0.0
    %92 = vmatpush.msra.mxu0 0.0
    %93 = vmatpush.msra.mxu0 0.0
    %94 = vmatpush.msra.mxu0 0.0
    %95 = vmatpush.msra.mxu0 0.0
    %96 = vmatpush.msra.mxu0 0.0
    %97 = vmatpush.msra.mxu0 0.0
    %98 = vmatpush.msra.mxu0 %v81
    %99 = vmatpush.msra.mxu0 %v80
    %100 = vmatpush.msra.mxu0 %v79
    %101 = vmatpush.msra.mxu0 %v78
    %102 = vmatpush.msra.mxu0 %v77
    %103 = vmatpush.msra.mxu0 %v76
    %104 = vmatmul.f32.gmra.mxu0 %v86
    %v105 = vpop.f32.mrf.mxu0
    %v106 = vadd.f32 %v83, %v105
    %107 = vdwg.mxu0
    %v108 = vmax.f32 %v106, 0.0
    %v109 = vld [vmem:[#allocation8 + $0x38] sm:$0xff]
    %v110 = vld [vmem:[#allocation8 + $0x40] sm:$0xff]
    %v111 = vld [vmem:[#allocation8 + $0x48] sm:$0xff]
    %v112 = vld [vmem:[#allocation8 + $0x50] sm:$0xff]
    %v113 = vld [vmem:[#allocation8 + $0x58] sm:$0xff]
    %v114 = vld [vmem:[#allocation8 + $0x60] sm:$0xff]
    %v115 = vld [vmem:[#allocation8 + $0x68] sm:$0xff]
    %v116 = vld [vmem:[#allocation8 + $0x70] sm:$0xff]
    %v117 = vld [vmem:[#allocation8 + $0x78] sm:$0x1]
    %v118 = vperm.slane %v117, 0
    %vm119 = vcmask 523264
    %v121 = vsel %vm119, %v108, 0
    %123 = vmatpush.msra.mxu0 0.0
    %124 = vmatpush.msra.mxu0 0.0
    %125 = vmatpush.msra.mxu0 0.0
    %126 = vmatpush.msra.mxu0 0.0
    %127 = vmatpush.msra.mxu0 0.0
    %128 = vmatpush.msra.mxu0 0.0
    %129 = vmatpush.msra.mxu0 0.0
    %130 = vmatpush.msra.mxu0 0.0
    %131 = vmatpush.msra.mxu0 %v116
    %132 = vmatpush.msra.mxu0 %v115
    %133 = vmatpush.msra.mxu0 %v114
    %134 = vmatpush.msra.mxu0 %v113
    %135 = vmatpush.msra.mxu0 %v112
    %136 = vmatpush.msra.mxu0 %v111
    %137 = vmatpush.msra.mxu0 %v110
    %138 = vmatpush.msra.mxu0 %v109
    %139 = vmatmul.f32.gmra.mxu0 %v121
    %v140 = vpop.f32.mrf.mxu0
    %v141 = vadd.f32 %v118, %v140
    %142 = vdwg.mxu0
    %v143 = vld [vmem:[#allocation5] sm:$0xff]
    %v144 = vld [vmem:[#allocation8 + $0x90] sm:$0x1]
    %vm145 = vcmp.eq.f32.partialorder %v143, 0.0
    %vm146 = vcmp.eq.f32.partialorder %v143, -2.0
    %vm147 = vmor %vm145, %vm146
    %v148 = vperm.slane %v144, 0
    %v149 = vsel %vm147, %v148, %v143
    %v150 = vld [vmem:[#allocation8 + $0x80] sm:$0xff]
    %v151 = vld [vmem:[#allocation8 + $0x88] sm:$0x7]
    %vm152 = vcmask 89088
    %v154 = vsel %vm152, %v149, 0
    %vm156 = vcmask 1042432
    %v158 = vsel %vm156, %v151, 0
    %160 = vmatpush.msra.mxu0 0.0
    %161 = vmatpush.msra.mxu0 0.0
    %162 = vmatpush.msra.mxu0 0.0
    %163 = vmatpush.msra.mxu0 0.0
    %164 = vmatpush.msra.mxu0 0.0
    %165 = vmatpush.msra.mxu0 0.0
    %166 = vmatpush.msra.mxu0 0.0
    %167 = vmatpush.msra.mxu0 0.0
    %168 = vmatpush.msra.mxu0 0.0
    %169 = vmatpush.msra.mxu0 0.0
    %170 = vmatpush.msra.mxu0 0.0
    %171 = vmatpush.msra.mxu0 0.0
    %172 = vmatpush.msra.mxu0 0.0
    %173 = vmatpush.msra.mxu0 0.0
    %174 = vmatpush.msra.mxu0 %v158
    %175 = vmatpush.msra.mxu0 %v150
    %176 = vmatmul.f32.gmra.mxu0 %v154
    %v177 = vpop.f32.mrf.mxu0
    %v178 = vadd.f32 0.0, %v177
    %179 = vdwg.mxu0
    %v180 = vxor.u32 %v141, 2147483648
    %v181 = vmul.f32 %v180, 1.442695
    %v182 = vpow.pop %v181
    %v183 = vadd.f32 %v182, 1.0
    %v184 = vrcp.pop %v183
    %v185 = vmul.f32 %v183, %v184
    %v186 = vsub.f32 1.0, %v185
    %v187 = vmul.f32 %v184, %v186
    %v188 = vadd.f32 %v184, %v187
    %vm189 = vweird.f32 %v183
    %vm190 = vweird.f32 %v184
    %vm191 = vmor %vm189, %vm190
    %v192 = vsel %vm191, %v184, %v188
    %v193 = vand.u32 2147483647, %v183
    %vm194 = vcmp.eq.f32.partialorder %v193, 8.507059e+37
    %v195 = vand.u32 %v183, 2147483648
    %v196 = vor.u32 1.1754944e-38, %v195
    %v197 = vsel %vm194, %v196, %v192
    %v198 = vmul.f32 1.0, %v197
    %200 = vrot.lane.b32.xlu0 %v198, 112
    %v201 = vpop.permute.xlu0 %200
    %v203 = vadd.f32 %v198, %v201
    %v204 = vadd.f32 %v203, %v178
    %v205 = vld [vmem:[#allocation7] sm:$0xff]
    %v206 = vmul.f32 %v204, %v205
    %vm207 = vcmask 130048
    %208 = vst.msk [vmem:[#allocation10] sm:$0xff] %vm207, %v206
    // Predicated region
    $region34: #{tpu_custom_call.1} parent=1 // pred_check
      _
    $region35: #{tpu_custom_call.1} parent=1 // pred_check_branch
      %210 = sbr.rel (0) target = $region37
    $region36: #{tpu_custom_call.1} parent=1 // pred_region
      %212 = vsyncadd [#allocation4], 0
      %s214 = sshll.u32 [#allocation10], 4
      %s215 = int_to_ptr.vmem [resolvable:$true] %s214
      %s216 = sshll.u32 %s4, 4
      %s217 = int_to_ptr.hbm [resolvable:$true] %s216
      %219 = dma.vmem_to_hbm [thread:$0]  %s215, 128, %s217, [#allocation4]
    $region37: #{tpu_custom_call.1} parent=1 // pred_fallthru
      _
    // Predicated region
    $region38: #{tpu_custom_call.1} parent=1 // pred_check
      _
    $region39: #{tpu_custom_call.1} parent=1 // pred_check_branch
      %221 = sbr.rel (0) target = $region41
    $region40: #{tpu_custom_call.1} parent=1 // pred_region
      %223 = dma.done [#allocation4], 128
    $region41: #{tpu_custom_call.1} parent=1 // pred_fallthru
      _
    %224 = vsyncpa [#allocation3], 1
    %225 = vsyncpa [#allocation6], 1
    %226 = vsyncpa [#allocation9], 1
    %227 = vsyncpa [#allocation4], 1

</llo_original>
